<compile_context>
chip_gen: v6e
topology: v6e:2x2x1
jax: 0.10.0
libtpu: 0.0.40
codegen_flags: <defaults>
</compile_context>

<pallas_src>
import jax
import jax.numpy as jnp
from jax.experimental import pallas as pl
from jax.experimental.pallas import tpu as pltpu

PATCH = 4
EMBED_DIM = 32
NUM_CLASSES = 8


def _vmem_spec():
    return pl.BlockSpec(memory_space=pltpu.MemorySpace.VMEM)


# ----------------------------- fused Pallas kernel ---------------------------

def fused_forward_kernel(patches_ref, w_embed_ref, head_ref, out_ref):
    # patches_ref: [B*N, P] f32    w_embed_ref: [P, D] f32
    # head_ref:    [D+1, C] f32    (rows 0..D-1 = w_head[D:, :], row D = fused bias)
    # out_ref:     [B, C]   f32
    D = w_embed_ref.shape[1]
    B, C = out_ref.shape
    BN = patches_ref.shape[0]
    N = BN // B
    inv_n = jnp.float32(1.0 / N)

    # --- synthetic backbone: patch embedding on the MXU (f32 accumulate; b_embed is
    #     folded into the head's fused bias because pooling + head are linear) ---
    emb = jnp.dot(patches_ref[...], w_embed_ref[...],
                  preferred_element_type=jnp.float32)            # [B*N, D]

    # --- dino pooling: mean over patch tokens per batch ---
    # N=16 keeps the reshape inside the (8,128) tile; the XLU reduce is fine here.
    # TODO(synk): at real sequence lengths, switch to a grid-carried per-batch
    # accumulator or a ones[1,N]@emb pooling matmul so the reduce rides the MXU.
    patch_mean = jnp.sum(emb.reshape(B, N, D), axis=1) * inv_n   # [B, D]

    head = head_ref[...]                                         # [D+1, C]
    w_head_patch = head[:D, :]                                   # [D, C] sublane-aligned
    fused_bias = head[D:, :]                                     # [1, C]

    logits = (jnp.dot(patch_mean, w_head_patch,
                      preferred_element_type=jnp.float32)
              + fused_bias)                                      # [B, C]

    # classifier_function = sigmoid
    out_ref[...] = jax.nn.sigmoid(logits)


# ------------------------------ param packing --------------------------------

def pack_params(params):
    """Constant-fold every batch-independent term into one fused head bias.

      concat(cls_feat, patch_mean_full) @ W + b
        = patch_mean_raw @ W[D:]                                   (in-kernel)
          + [(cls + pos[0]) @ W[:D] + (b_embed + mean(pos[1:])) @ W[D:] + b]  (folded)

    Done once outside the hot path. Only valid while the synthetic backbone is
    linear; re-derive when a real transformer replaces the stub.
    """
    D = EMBED_DIM
    pos = params["pos_embed"].reshape(-1, D)                      # [S, D]
    cls = params["cls_token"].reshape(1, D)                       # [1, D]
    w_head = params["w_head"]                                     # [2D, C]
    pos_patch_mean = jnp.mean(pos[1:, :], axis=0, keepdims=True)  # [1, D]
    fused_bias = (
        (cls + pos[:1, :]) @ w_head[:D, :]
        + (params["b_embed"] + pos_patch_mean) @ w_head[D:, :]
        + params["b_head"]
    )                                                             # [1, C]
    head_slab = jnp.concatenate([w_head[D:, :], fused_bias], axis=0)  # [D+1, C]
    return {"w_embed": params["w_embed"], "head_slab": head_slab}


# ------------------------------ wrapper --------------------------------------

def huggingface_model_forward(x, packed):
    """x: [B, C, H, W] float32 (NCHW, as in PyTorch)."""
    B, C, H, W = x.shape
    nh, nw = H // PATCH, W // PATCH
    N = nh * nw
    P = C * PATCH * PATCH
    D = EMBED_DIM

    # glue: patchify NCHW image into [B*N, P] rows (tiny at these shapes)
    # TODO(synk): at real image sizes do this gather in-kernel (BlockSpec index_map /
    # per-patch pl.ds DMA) so the image is read from HBM exactly once.
    patches = x.reshape(B, C, nh, PATCH, nw, PATCH)
    patches = patches.transpose(0, 2, 4, 1, 3, 5).reshape(B * N, P)

    flops = 2 * (B * N) * P * D + (B * N) * D + 2 * B * D * NUM_CLASSES
    bytes_accessed = 4 * (
        patches.size + packed["w_embed"].size + packed["head_slab"].size
        + B * NUM_CLASSES
    )

    return pl.pallas_call(
        fused_forward_kernel,
        out_shape=jax.ShapeDtypeStruct((B, NUM_CLASSES), jnp.float32),
        in_specs=[_vmem_spec()] * 3,
        out_specs=_vmem_spec(),
        cost_estimate=pl.CostEstimate(
            flops=flops,
            transcendentals=B * NUM_CLASSES,
            bytes_accessed=bytes_accessed,
        ),
    )(patches, packed["w_embed"], packed["head_slab"])


# ------------------------------ reference ------------------------------------

def reference_forward(x, params):
    B, C, H, W = x.shape
    nh, nw = H // PATCH, W // PATCH
    N = nh * nw
    patches = x.reshape(B, C, nh, PATCH, nw, PATCH)
    patches = patches.transpose(0, 2, 4, 1, 3, 5).reshape(B * N, C * PATCH * PATCH)
    emb = (patches @ params["w_embed"] + params["b_embed"]).reshape(B, N, EMBED_DIM)
    cls = jnp.broadcast_to(params["cls_token"], (B, 1, EMBED_DIM))
    seq = jnp.concatenate([cls, emb], axis=1) + params["pos_embed"]
    feat = jnp.concatenate([seq[:, 0, :], jnp.mean(seq[:, 1:, :], axis=1)], axis=1)
    return jax.nn.sigmoid(feat @ params["w_head"] + params["b_head"])


def init_params(key, in_chans=3, img=16):
    P = in_chans * PATCH * PATCH
    N = (img // PATCH) * (img // PATCH)
    k = jax.random.split(key, 5)
    return {
        "w_embed": 0.02 * jax.random.normal(k[0], (P, EMBED_DIM), jnp.float32),
        "b_embed": jnp.zeros((1, EMBED_DIM), jnp.float32),
        "cls_token": 0.02 * jax.random.normal(k[1], (1, 1, EMBED_DIM), jnp.float32),
        "pos_embed": 0.02 * jax.random.normal(k[2], (1, N + 1, EMBED_DIM), jnp.float32),
        # head operates on concat(cls, patch_mean) -> 2*EMBED_DIM features
        "w_head": 0.02 * jax.random.normal(k[3], (2 * EMBED_DIM, NUM_CLASSES), jnp.float32),
        "b_head": jnp.zeros((1, NUM_CLASSES), jnp.float32),
    }


if __name__ == "__main__":
    key = jax.random.PRNGKey(0)
    k_x, k_p = jax.random.split(key)
    x = jax.random.normal(k_x, (2, 3, 16, 16), jnp.float32)   # NCHW, small image
    params = init_params(k_p, in_chans=3, img=16)
    packed = pack_params(params)                               # one-time constant fold

    out = huggingface_model_forward(x, packed)
    out = jax.block_until_ready(out)

    assert out.shape == (2, NUM_CLASSES)
    assert bool(jnp.all((out >= 0.0) & (out <= 1.0)))          # sigmoid range

    ref = reference_forward(x, params)
    assert bool(jnp.all(jnp.abs(out - ref) < 1e-5))            # f32 end-to-end

    print("KERNEL_OK")
</pallas_src>

<mosaic_0001>
module attributes {stable_mosaic.version = 11 : i64} {
  func.func @fused_forward_kernel(%arg0: memref<32x48xf32, #tpu.memory_space<vmem>>, %arg1: memref<48x32xf32, #tpu.memory_space<vmem>>, %arg2: memref<33x8xf32, #tpu.memory_space<vmem>>, %arg3: memref<2x8xf32, #tpu.memory_space<vmem>>) attributes {dimension_semantics = [], scalar_prefetch = 0 : i64, scratch_operands = 0 : i64, tpu.core_type = #tpu.core_type<tc>} {
    %c0 = arith.constant 0 : index
    %c0_0 = arith.constant 0 : index
    %0 = vector.load %arg0[%c0, %c0_0] : memref<32x48xf32, #tpu.memory_space<vmem>>, vector<32x48xf32>
    %c0_1 = arith.constant 0 : index
    %c0_2 = arith.constant 0 : index
    %1 = vector.load %arg1[%c0_1, %c0_2] : memref<48x32xf32, #tpu.memory_space<vmem>>, vector<48x32xf32>
    %cst = arith.constant dense<0.000000e+00> : vector<32x32xf32>
    %2 = tpu.matmul %0, %1, %cst {dimension_numbers = #tpu.dot_dimension_numbers<[1], [0], [0], [1], [0, 0, 1, 1], [], []>} : vector<32x48xf32>, vector<48x32xf32>, vector<32x32xf32> -> vector<32x32xf32>
    %3 = vector.shape_cast %2 : vector<32x32xf32> to vector<2x16x32xf32>
    %cst_3 = arith.constant dense<0.000000e+00> : vector<2x32xf32>
    %4 = vector.multi_reduction <add>, %3, %cst_3 [1] : vector<2x16x32xf32> to vector<2x32xf32>
    %cst_4 = arith.constant 6.250000e-02 : f32
    %5 = vector.broadcast %cst_4 : f32 to vector<2x32xf32>
    %6 = arith.mulf %4, %5 : vector<2x32xf32>
    %c0_5 = arith.constant 0 : index
    %c0_6 = arith.constant 0 : index
    %7 = vector.load %arg2[%c0_5, %c0_6] : memref<33x8xf32, #tpu.memory_space<vmem>>, vector<33x8xf32>
    %8 = vector.extract_strided_slice %7 {offsets = [0, 0], sizes = [32, 8], strides = [1, 1]} : vector<33x8xf32> to vector<32x8xf32>
    %9 = vector.extract_strided_slice %7 {offsets = [32, 0], sizes = [1, 8], strides = [1, 1]} : vector<33x8xf32> to vector<1x8xf32>
    %cst_7 = arith.constant dense<0.000000e+00> : vector<2x8xf32>
    %10 = tpu.matmul %6, %8, %cst_7 {dimension_numbers = #tpu.dot_dimension_numbers<[1], [0], [0], [1], [0, 0, 1, 1], [], []>} : vector<2x32xf32>, vector<32x8xf32>, vector<2x8xf32> -> vector<2x8xf32>
    %11 = vector.broadcast %9 : vector<1x8xf32> to vector<2x8xf32>
    %12 = arith.addf %10, %11 : vector<2x8xf32>
    %13 = arith.negf %12 : vector<2x8xf32>
    %14 = math.exp %13 : vector<2x8xf32>
    %cst_8 = arith.constant 1.000000e+00 : f32
    %15 = vector.broadcast %cst_8 : f32 to vector<2x8xf32>
    %16 = arith.addf %15, %14 : vector<2x8xf32>
    %17 = arith.divf %15, %16 : vector<2x8xf32>
    %c0_9 = arith.constant 0 : index
    %c0_10 = arith.constant 0 : index
    %18 = vector.load %arg3[%c0_9, %c0_10] : memref<2x8xf32, #tpu.memory_space<vmem>>, vector<2x8xf32>
    tpu.vector_store %arg3[%c0_9, %c0_10], %17 {strides = array<i32>} : memref<2x8xf32, #tpu.memory_space<vmem>>, vector<2x8xf32>,
    return
  }
}

</mosaic_0001>

<llo_original>
// kernel: tpu_custom_call.1
$region0: #{tpu_custom_call.1}
  #allocation0 [shape = 'u32[]', space=smem, size = 0x4, offset = 0x4, fixed_abs, tag = 'smem constant byte address 0x4 - core index']
  #allocation1 [shape = 'u32[144,128]{1,0:T(1,128)}', space=vmem, size = 0x12000, scoped, tag = 'internal scratch']
  %s0 = inlined_call_operand.vmem [shape: f32[32,48], index: 0, kind: input, shape index: {}]
  %s1 = inlined_call_operand.vmem [shape: f32[48,32], index: 1, kind: input, shape index: {}]
  %s2 = inlined_call_operand.vmem [shape: f32[33,8], index: 2, kind: input, shape index: {}]
  %s3 = inlined_call_operand.hbm [shape: f32[2,8], index: 3, kind: output, shape index: {}]
  %s4 = sld [smem:[#allocation0]]
  $region22: #{tpu_custom_call.1} parent=0
    _
  %s6 = ssub.s32 1, %s4
  %s7 = scalar_select 0, %s6, %s4
  $region1: #{tpu_custom_call.1} parent=0
    #allocation2 [shape = 'u8[1024]{0}', space=vmem, size = 0x400, scoped, tag = 'output window, operand 0, single buffered']
    #allocation3 [shape = 's32[1]{0}', space=sflag, size = 0x4, scoped, tag = 'scoped memory for tpu_custom_call.1']
    %8 = vsyncpa [#allocation3], 0
    // Predicated region
    $region2: #{tpu_custom_call.1} parent=1 // pred_check
      _
    $region3: #{tpu_custom_call.1} parent=1 // pred_check_branch
      %10 = sbr.rel (0) target = $region5
    $region4: #{tpu_custom_call.1} parent=1 // pred_region
      _
    $region5: #{tpu_custom_call.1} parent=1 // pred_fallthru
      _
    // Predicated region
    $region6: #{tpu_custom_call.1} parent=1 // pred_check
      _
    $region7: #{tpu_custom_call.1} parent=1 // pred_check_branch
      %12 = sbr.rel (0) target = $region9
    $region8: #{tpu_custom_call.1} parent=1 // pred_region
      _
    $region9: #{tpu_custom_call.1} parent=1 // pred_fallthru
      _
    // Predicated region
    $region10: #{tpu_custom_call.1} parent=1 // pred_check
      _
    $region11: #{tpu_custom_call.1} parent=1 // pred_check_branch
      %14 = sbr.rel (0) target = $region13
    $region12: #{tpu_custom_call.1} parent=1 // pred_region
      _
    $region13: #{tpu_custom_call.1} parent=1 // pred_fallthru
      _
    %v15 = vld [vmem:[%s0] sm:$0xff]
    %v16 = vld [vmem:[%s0 + $0x8] sm:$0xff]
    %v17 = vld [vmem:[%s0 + $0x10] sm:$0xff]
    %v18 = vld [vmem:[%s0 + $0x18] sm:$0xff]
    %v19 = vld [vmem:[%s1] sm:$0xff]
    %v20 = vld [vmem:[%s1 + $0x8] sm:$0xff]
    %v21 = vld [vmem:[%s1 + $0x10] sm:$0xff]
    %v22 = vld [vmem:[%s1 + $0x18] sm:$0xff]
    %v23 = vld [vmem:[%s1 + $0x20] sm:$0xff]
    %v24 = vld [vmem:[%s1 + $0x28] sm:$0xff]
    %vm25 = vcmask 392192
    %v27 = vsel %vm25, %v15, 0
    %v30 = vsel %vm25, %v16, 0
    %v33 = vsel %vm25, %v17, 0
    %v36 = vsel %vm25, %v18, 0
    %38 = vmatprep.subr.mxu0 0.0
    %39 = vmatpush1.msra.mxu0 0.0
    %40 = vmatprep.subr.mxu0 0.0
    %41 = vmatpush1.msra.mxu0 0.0
    %42 = vmatprep.subr.mxu0 0.0
    %43 = vmatpush1.msra.mxu0 0.0
    %44 = vmatprep.subr.mxu0 0.0
    %45 = vmatpush1.msra.mxu0 0.0
    %46 = vmatprep.subr.mxu0 0.0
    %47 = vmatpush1.msra.mxu0 0.0
    %48 = vmatprep.subr.mxu0 0.0
    %49 = vmatpush1.msra.mxu0 0.0
    %50 = vmatprep.subr.mxu0 0.0
    %51 = vmatpush1.msra.mxu0 0.0
    %52 = vmatprep.subr.mxu0 0.0
    %53 = vmatpush1.msra.mxu0 0.0
    %54 = vmatprep.subr.mxu0 0.0
    %55 = vmatpush1.msra.mxu0 0.0
    %56 = vmatprep.subr.mxu0 0.0
    %57 = vmatpush1.msra.mxu0 0.0
    %58 = vmatprep.subr.mxu0 0.0
    %59 = vmatpush1.msra.mxu0 %v24
    %60 = vmatprep.subr.mxu0 0.0
    %61 = vmatpush1.msra.mxu0 %v23
    %62 = vmatprep.subr.mxu0 0.0
    %63 = vmatpush1.msra.mxu0 %v22
    %64 = vmatprep.subr.mxu0 0.0
    %65 = vmatpush1.msra.mxu0 %v21
    %66 = vmatprep.subr.mxu0 0.0
    %67 = vmatpush1.msra.mxu0 %v20
    %68 = vmatprep.subr.mxu0 0.0
    %69 = vmatpush1.msra.mxu0 %v19
    %70 = vmatprep.subr.mxu0 0.0
    %71 = vmatpush2.msra.mxu0 0.0
    %72 = vmatprep.subr.mxu0 0.0
    %73 = vmatpush2.msra.mxu0 0.0
    %74 = vmatprep.subr.mxu0 0.0
    %75 = vmatpush2.msra.mxu0 0.0
    %76 = vmatprep.subr.mxu0 0.0
    %77 = vmatpush2.msra.mxu0 0.0
    %78 = vmatprep.subr.mxu0 0.0
    %79 = vmatpush2.msra.mxu0 0.0
    %80 = vmatprep.subr.mxu0 0.0
    %81 = vmatpush2.msra.mxu0 0.0
    %82 = vmatprep.subr.mxu0 0.0
    %83 = vmatpush2.msra.mxu0 0.0
    %84 = vmatprep.subr.mxu0 0.0
    %85 = vmatpush2.msra.mxu0 0.0
    %86 = vmatprep.subr.mxu0 0.0
    %87 = vmatpush2.msra.mxu0 0.0
    %88 = vmatprep.subr.mxu0 0.0
    %89 = vmatpush2.msra.mxu0 0.0
    %90 = vmatprep.subr.mxu0 0.0
    %91 = vmatpush2.msra.mxu0 0.0
    %92 = vmatprep.subr.mxu0 0.0
    %93 = vmatpush2.msra.mxu0 0.0
    %94 = vmatprep.subr.mxu0 0.0
    %95 = vmatpush2.msra.mxu0 0.0
    %96 = vmatprep.subr.mxu0 0.0
    %97 = vmatpush2.msra.mxu0 0.0
    %98 = vmatprep.subr.mxu0 0.0
    %99 = vmatpush2.msra.mxu0 0.0
    %100 = vmatprep.subr.mxu0 0.0
    %101 = vmatpush2.msra.mxu0 0.0
    %102 = vmatprep.mubr.f32.mxu0 0.0
    %103 = vmatmul.mubr.f32.gmra.mxu0 %v27
    %v104 = vpop.f32.mrf.mxu0
    %v105 = vadd.f32 0.0, %v104
    %v106 = vpop.f32.mrf.mxu0
    %107 = vmatprep.mubr.f32.mxu0 0.0
    %108 = vmatmul.mubr.f32.gmra.mxu0 %v30
    %v109 = vpop.f32.mrf.mxu0
    %v110 = vadd.f32 0.0, %v109
    %v111 = vpop.f32.mrf.mxu0
    %112 = vmatprep.mubr.f32.mxu0 0.0
    %113 = vmatmul.mubr.f32.gmra.mxu0 %v33
    %v114 = vpop.f32.mrf.mxu0
    %v115 = vadd.f32 0.0, %v114
    %v116 = vpop.f32.mrf.mxu0
    %117 = vmatprep.mubr.f32.mxu0 0.0
    %118 = vmatmul.mubr.f32.gmra.mxu0 %v36
    %v119 = vpop.f32.mrf.mxu0
    %v120 = vadd.f32 0.0, %v119
    %v121 = vpop.f32.mrf.mxu0
    %122 = vdwg.mxu0
    %vm123 = vcmask 261120
    %v124 = vsel %vm123, %v105, 0.0
    %v125 = vsel %vm123, %v110, 0.0
    %v126 = vadd.f32 %v124, %v125
    %v127 = vrot.slane %v126, 4
    %v128 = vadd.f32 %v126, %v127
    %v129 = vrot.slane %v128, 2
    %v130 = vadd.f32 %v128, %v129
    %v131 = vrot.slane %v130, 1
    %v132 = vadd.f32 %v130, %v131
    %v133 = vsel %vm123, %v115, 0.0
    %v134 = vsel %vm123, %v120, 0.0
    %v135 = vadd.f32 %v133, %v134
    %v136 = vrot.slane %v135, 4
    %v137 = vadd.f32 %v135, %v136
    %v138 = vrot.slane %v137, 2
    %v139 = vadd.f32 %v137, %v138
    %v140 = vrot.slane %v139, 1
    %v141 = vadd.f32 %v139, %v140
    %v142 = vmul.f32 %v132, 0.0625
    %v143 = vmul.f32 %v141, 0.0625
    %v144 = vld [vmem:[%s2] sm:$0xff]
    %v145 = vld [vmem:[%s2 + $0x8] sm:$0xff]
    %v146 = vld [vmem:[%s2 + $0x10] sm:$0xff]
    %v147 = vld [vmem:[%s2 + $0x18] sm:$0xff]
    %v148 = vld [vmem:[%s2 + $0x20] sm:$0x1]
    %v149 = vlaneseq
    %v150 = vshrl.u32 %v149, 7
    %v151 = vsub.s32 0, %v150
    %v152 = vrot.slane %v148, %v151
    %vm155 = vcmask 1041409
    %v156 = vsel %vm155, %v143, %v142
    %v157 = vsel %vm123, %v156, 0
    %159 = vmatprep.subr.mxu0 0.0
    %160 = vmatpush1.msra.mxu0 0.0
    %161 = vmatprep.subr.mxu0 0.0
    %162 = vmatpush1.msra.mxu0 0.0
    %163 = vmatprep.subr.mxu0 0.0
    %164 = vmatpush1.msra.mxu0 0.0
    %165 = vmatprep.subr.mxu0 0.0
    %166 = vmatpush1.msra.mxu0 0.0
    %167 = vmatprep.subr.mxu0 0.0
    %168 = vmatpush1.msra.mxu0 0.0
    %169 = vmatprep.subr.mxu0 0.0
    %170 = vmatpush1.msra.mxu0 0.0
    %171 = vmatprep.subr.mxu0 0.0
    %172 = vmatpush1.msra.mxu0 0.0
    %173 = vmatprep.subr.mxu0 0.0
    %174 = vmatpush1.msra.mxu0 0.0
    %175 = vmatprep.subr.mxu0 0.0
    %176 = vmatpush1.msra.mxu0 0.0
    %177 = vmatprep.subr.mxu0 0.0
    %178 = vmatpush1.msra.mxu0 0.0
    %179 = vmatprep.subr.mxu0 0.0
    %180 = vmatpush1.msra.mxu0 0.0
    %181 = vmatprep.subr.mxu0 0.0
    %182 = vmatpush1.msra.mxu0 0.0
    %183 = vmatprep.subr.mxu0 0.0
    %184 = vmatpush1.msra.mxu0 %v147
    %185 = vmatprep.subr.mxu0 0.0
    %186 = vmatpush1.msra.mxu0 %v146
    %187 = vmatprep.subr.mxu0 0.0
    %188 = vmatpush1.msra.mxu0 %v145
    %189 = vmatprep.subr.mxu0 0.0
    %190 = vmatpush1.msra.mxu0 %v144
    %191 = vmatprep.subr.mxu0 0.0
    %192 = vmatpush2.msra.mxu0 0.0
    %193 = vmatprep.subr.mxu0 0.0
    %194 = vmatpush2.msra.mxu0 0.0
    %195 = vmatprep.subr.mxu0 0.0
    %196 = vmatpush2.msra.mxu0 0.0
    %197 = vmatprep.subr.mxu0 0.0
    %198 = vmatpush2.msra.mxu0 0.0
    %199 = vmatprep.subr.mxu0 0.0
    %200 = vmatpush2.msra.mxu0 0.0
    %201 = vmatprep.subr.mxu0 0.0
    %202 = vmatpush2.msra.mxu0 0.0
    %203 = vmatprep.subr.mxu0 0.0
    %204 = vmatpush2.msra.mxu0 0.0
    %205 = vmatprep.subr.mxu0 0.0
    %206 = vmatpush2.msra.mxu0 0.0
    %207 = vmatprep.subr.mxu0 0.0
    %208 = vmatpush2.msra.mxu0 0.0
    %209 = vmatprep.subr.mxu0 0.0
    %210 = vmatpush2.msra.mxu0 0.0
    %211 = vmatprep.subr.mxu0 0.0
    %212 = vmatpush2.msra.mxu0 0.0
    %213 = vmatprep.subr.mxu0 0.0
    %214 = vmatpush2.msra.mxu0 0.0
    %215 = vmatprep.subr.mxu0 0.0
    %216 = vmatpush2.msra.mxu0 0.0
    %217 = vmatprep.subr.mxu0 0.0
    %218 = vmatpush2.msra.mxu0 0.0
    %219 = vmatprep.subr.mxu0 0.0
    %220 = vmatpush2.msra.mxu0 0.0
    %221 = vmatprep.subr.mxu0 0.0
    %222 = vmatpush2.msra.mxu0 0.0
    %223 = vmatprep.mubr.f32.mxu0 0.0
    %224 = vmatmul.mubr.f32.gmra.mxu0 %v157
    %v225 = vpop.f32.mrf.mxu0
    %v226 = vadd.f32 %v152, %v225
    %v227 = vpop.f32.mrf.mxu0
    %228 = vdwg.mxu0
    %v229 = vxor.u32 %v226, 2147483648
    %v230 = vmul.f32 %v229, 1.442695
    %v231 = vpow.pop %v230
    %v232 = vadd.f32 %v231, 1.0
    %v233 = vrcp.pop %v232
    %v234 = vmul.f32 1.0, %v233
    %vm235 = vcmask 58368
    %236 = vst.msk [vmem:[#allocation2] sm:$0x3] %vm235, %v234
    // Predicated region
    $region14: #{tpu_custom_call.1} parent=1 // pred_check
      _
    $region15: #{tpu_custom_call.1} parent=1 // pred_check_branch
      %238 = sbr.rel (0) target = $region17
    $region16: #{tpu_custom_call.1} parent=1 // pred_region
      %s240 = ssub.s32 32, 32
      %241 = vsyncadd [#allocation3], %s240
      %s243 = sshll.u32 [#allocation2], 4
      %s244 = int_to_ptr.vmem [resolvable:$true] %s243
      %246 = dma.vmem_to_hbm [thread:$0]  %s244, 32, %s3, [#allocation3]
    $region17: #{tpu_custom_call.1} parent=1 // pred_fallthru
      _
    // Predicated region
    $region18: #{tpu_custom_call.1} parent=1 // pred_check
      _
    $region19: #{tpu_custom_call.1} parent=1 // pred_check_branch
      %248 = sbr.rel (0) target = $region21
    $region20: #{tpu_custom_call.1} parent=1 // pred_region
      %249 = dma.done [#allocation3], 32
    $region21: #{tpu_custom_call.1} parent=1 // pred_fallthru
      _
    %250 = vsyncpa [#allocation3], 1

</llo_original>
